<compile_context>
chip_gen: v7x
topology: tpu7x:2x2x1
jax: 0.10.0
libtpu: 0.0.40
codegen_flags: <defaults>
</compile_context>

<pallas_src>
import math
import jax
import jax.numpy as jnp
from jax.experimental import pallas as pl
from jax.experimental.pallas import tpu as pltpu


def _build_embedding(dim, max_steps=500):
    """Matches DiffusionEmbedding._build_embedding exactly."""
    steps = jnp.arange(max_steps, dtype=jnp.float32)[:, None]          # (max_steps, 1)
    dims = jnp.arange(dim, dtype=jnp.float32)[None, :]                 # (1, dim)
    table = steps * 10.0 ** (dims * 4.0 / dim)                         # (max_steps, dim)
    return jnp.concatenate([jnp.sin(table), jnp.cos(table)], axis=1)   # (max_steps, 2*dim)


def _fused_kernel(step_ref, table_hbm, w1_ref, w2_ref, bias_ref, o_ref,
                  x_scratch, copy_sem):
    B = o_ref.shape[0]
    max_steps = table_hbm.shape[0]

    # --- fused gather: B parallel ~512 B row DMAs, HBM -> VMEM scratch ----
    # B is small and static -> unrolled; all DMAs are in flight before the
    # first wait.  Steps are clamped so an out-of-range index cannot read
    # outside the table.
    copies = []
    for i in range(B):
        idx = jnp.minimum(jnp.maximum(step_ref[i], 0), max_steps - 1)
        cp = pltpu.make_async_copy(
            table_hbm.at[pl.ds(idx, 1), :],
            x_scratch.at[pl.ds(i, 1), :],
            copy_sem.at[i],
        )
        cp.start()
        copies.append(cp)
    for cp in copies:
        cp.wait()

    compute_dtype = w1_ref.dtype                    # bf16 (or f32)
    x = x_scratch[...].astype(compute_dtype)        # single (B, 2*dim) load

    # projection1 + SiLU (MXU in compute dtype, f32 accumulation, f32 epilogue)
    h = jnp.dot(x, w1_ref[...], preferred_element_type=jnp.float32)
    h = h + bias_ref[0:1, :]
    h = h * jax.nn.sigmoid(h)                        # F.silu

    # projection2 + SiLU
    y = jnp.dot(h.astype(compute_dtype), w2_ref[...],
                preferred_element_type=jnp.float32)
    y = y + bias_ref[1:2, :]
    y = y * jax.nn.sigmoid(y)                        # F.silu

    o_ref[...] = y.astype(o_ref.dtype)


def prepare_params(table, w1, b1, w2, b2, compute_dtype=jnp.bfloat16):
    """One-time parameter prep (hoisted out of the per-step hot path)."""
    proj_dim = w1.shape[1]
    # Table stays f32: only B rows are ever DMA'd, so shrinking it buys
    # nothing, and 32-bit rows keep the per-row DMA simple (no packed-dtype
    # sub-row transfers).
    biases = jnp.stack(
        [b1.reshape(proj_dim), b2.reshape(proj_dim)], axis=0).astype(jnp.float32)
    return (
        table.astype(jnp.float32),
        w1.astype(compute_dtype),
        w2.astype(compute_dtype),
        biases,
    )


@jax.jit
def diffusion_embedding_forward(diffusion_step, table, w1, w2, biases):
    """diffusion_step: (B,) int32 indices into `table`. Returns (B, proj_dim) f32."""
    B = diffusion_step.shape[0]
    max_steps, in_dim = table.shape
    proj_dim = w1.shape[1]
    w_bytes = jnp.dtype(w1.dtype).itemsize

    cost = pl.CostEstimate(
        flops=2 * B * in_dim * proj_dim + 2 * B * proj_dim * proj_dim,
        transcendentals=2 * B * proj_dim,
        bytes_accessed=(B * in_dim * 4                   # gathered table rows
                        + in_dim * proj_dim * w_bytes    # W1
                        + proj_dim * proj_dim * w_bytes  # W2
                        + 2 * proj_dim * 4               # biases
                        + B * 4                          # step indices
                        + B * proj_dim * 4),             # output
    )

    grid_spec = pltpu.PrefetchScalarGridSpec(
        num_scalar_prefetch=1,          # diffusion_step -> SMEM
        grid=(1,),                      # single shot, single TC (per review)
        in_specs=[
            pl.BlockSpec(memory_space=pl.ANY),                            # table (HBM)
            pl.BlockSpec((in_dim, proj_dim), lambda g, steps: (0, 0)),    # W1
            pl.BlockSpec((proj_dim, proj_dim), lambda g, steps: (0, 0)),  # W2
            pl.BlockSpec((2, proj_dim), lambda g, steps: (0, 0)),         # b1|b2
        ],
        out_specs=pl.BlockSpec((B, proj_dim), lambda g, steps: (0, 0)),
        scratch_shapes=[
            pltpu.VMEM((B, in_dim), jnp.float32),    # gathered embedding rows
            pltpu.SemaphoreType.DMA((B,)),           # one sem per row DMA
        ],
    )

    return pl.pallas_call(
        _fused_kernel,
        out_shape=jax.ShapeDtypeStruct((B, proj_dim), jnp.float32),
        grid_spec=grid_spec,
        cost_estimate=cost,
    )(diffusion_step.astype(jnp.int32), table, w1, w2, biases)


def _reference(diffusion_step, table, w1, b1, w2, b2):
    """Plain-JAX f32 reference matching the PyTorch module."""
    x = table[diffusion_step]
    h = x @ w1 + b1
    h = h * jax.nn.sigmoid(h)
    y = h @ w2 + b2
    return y * jax.nn.sigmoid(y)


if __name__ == "__main__":
    # Small shapes consistent with the module.
    dim = 64            # -> embedding rows have 2*dim = 128 features
    proj_dim = 128
    max_steps = 500
    batch = 8

    key = jax.random.PRNGKey(0)
    k1, k2, k3, k4, k5 = jax.random.split(key, 5)

    table = _build_embedding(dim, max_steps)                       # (500, 128)

    # Deterministic parameter init (PyTorch Linear-style uniform bounds).
    in1 = 2 * dim
    bound1 = 1.0 / math.sqrt(in1)
    w1 = jax.random.uniform(k1, (in1, proj_dim), jnp.float32, -bound1, bound1)
    b1 = jax.random.uniform(k2, (proj_dim,), jnp.float32, -bound1, bound1)

    bound2 = 1.0 / math.sqrt(proj_dim)
    w2 = jax.random.uniform(k3, (proj_dim, proj_dim), jnp.float32, -bound2, bound2)
    b2 = jax.random.uniform(k4, (proj_dim,), jnp.float32, -bound2, bound2)

    diffusion_step = jax.random.randint(k5, (batch,), 0, max_steps, dtype=jnp.int32)

    ref = _reference(diffusion_step, table, w1, b1, w2, b2)

    # 1) f32 compute path: tight check against the f32 reference.
    params_f32 = prepare_params(table, w1, b1, w2, b2, compute_dtype=jnp.float32)
    out_f32 = jax.block_until_ready(
        diffusion_embedding_forward(diffusion_step, *params_f32))
    assert out_f32.shape == (batch, proj_dim)
    assert jnp.allclose(out_f32, ref, atol=1e-4, rtol=1e-4), "f32 mismatch vs reference"

    # 2) bf16 MXU-input path (recommended on v6e/v7x), f32 accumulation:
    #    relaxed tolerance vs the f32 reference.
    params_bf16 = prepare_params(table, w1, b1, w2, b2, compute_dtype=jnp.bfloat16)
    out_bf16 = jax.block_until_ready(
        diffusion_embedding_forward(diffusion_step, *params_bf16))
    assert out_bf16.shape == (batch, proj_dim)
    assert jnp.allclose(out_bf16, ref, atol=3e-2, rtol=3e-2), "bf16 mismatch vs reference"

    print("KERNEL_OK")
</pallas_src>

<mosaic_0001>
module attributes {stable_mosaic.version = 11 : i64} {
  func.func @_fused_kernel(%arg0: i32, %arg1: memref<8xi32, #tpu.memory_space<smem>>, %arg2: memref<500x128xf32, #tpu.memory_space<any>>, %arg3: memref<128x128xf32, #tpu.memory_space<vmem>>, %arg4: memref<128x128xf32, #tpu.memory_space<vmem>>, %arg5: memref<2x128xf32, #tpu.memory_space<vmem>>, %arg6: memref<8x128xf32, #tpu.memory_space<vmem>>, %arg7: memref<8x128xf32, #tpu.memory_space<vmem>>, %arg8: memref<8x!tpu.dma_semaphore, #tpu.memory_space<semaphore_mem>>) attributes {dimension_semantics = [#tpu.dimension_semantics<arbitrary>], iteration_bounds = array<i64: 1>, scalar_prefetch = 1 : i64, scratch_operands = 2 : i64, tpu.core_type = #tpu.core_type<tc>, window_params = [{}, {pipeline_mode = #tpu.pipeline_mode<synchronous>, transform_indices = @transform_1, window_bounds = array<i64: 128, 128>}, {pipeline_mode = #tpu.pipeline_mode<synchronous>, transform_indices = @transform_2, window_bounds = array<i64: 128, 128>}, {pipeline_mode = #tpu.pipeline_mode<synchronous>, transform_indices = @transform_3, window_bounds = array<i64: 2, 128>}, {pipeline_mode = #tpu.pipeline_mode<synchronous>, transform_indices = @transform_4, window_bounds = array<i64: 8, 128>}]} {
    %c0 = arith.constant 0 : index
    %0 = memref.load %arg1[%c0] : memref<8xi32, #tpu.memory_space<smem>>
    %c0_i32 = arith.constant 0 : i32
    %1 = arith.maxsi %0, %c0_i32 : i32
    %c499_i32 = arith.constant 499 : i32
    %2 = arith.minsi %1, %c499_i32 : i32
    %c0_i32_0 = arith.constant 0 : i32
    %c0_i32_1 = arith.constant 0 : i32
    %3 = tpu.memref_slice %arg2[%2, %c0_i32_1] : memref<500x128xf32, #tpu.memory_space<any>> -> memref<1x128xf32, #tpu.memory_space<any>>
    %c0_i32_2 = arith.constant 0 : i32
    %c0_i32_3 = arith.constant 0 : i32
    %4 = tpu.memref_slice %arg7[%c0_i32_2, %c0_i32_3] : memref<8x128xf32, #tpu.memory_space<vmem>> -> memref<1x128xf32, #tpu.memory_space<vmem>>
    %5 = tpu.memref_slice %arg8[%c0_i32_0] : memref<8x!tpu.dma_semaphore, #tpu.memory_space<semaphore_mem>> -> memref<1x!tpu.dma_semaphore, #tpu.memory_space<semaphore_mem>>
    %6 = tpu.memref_squeeze %5 : memref<1x!tpu.dma_semaphore, #tpu.memory_space<semaphore_mem>> -> memref<!tpu.dma_semaphore, #tpu.memory_space<semaphore_mem>>
    tpu.enqueue_dma source(%3 : memref<1x128xf32, #tpu.memory_space<any>>) target(%4 : memref<1x128xf32, #tpu.memory_space<vmem>>) target_semaphore(%6 : memref<!tpu.dma_semaphore, #tpu.memory_space<semaphore_mem>>)
    %c1 = arith.constant 1 : index
    %7 = memref.load %arg1[%c1] : memref<8xi32, #tpu.memory_space<smem>>
    %c0_i32_4 = arith.constant 0 : i32
    %8 = arith.maxsi %7, %c0_i32_4 : i32
    %c499_i32_5 = arith.constant 499 : i32
    %9 = arith.minsi %8, %c499_i32_5 : i32
    %c1_i32 = arith.constant 1 : i32
    %c0_i32_6 = arith.constant 0 : i32
    %10 = tpu.memref_slice %arg2[%9, %c0_i32_6] : memref<500x128xf32, #tpu.memory_space<any>> -> memref<1x128xf32, #tpu.memory_space<any>>
    %c1_i32_7 = arith.constant 1 : i32
    %c0_i32_8 = arith.constant 0 : i32
    %11 = tpu.memref_slice %arg7[%c1_i32_7, %c0_i32_8] : memref<8x128xf32, #tpu.memory_space<vmem>> -> memref<1x128xf32, #tpu.memory_space<vmem>>
    %12 = tpu.memref_slice %arg8[%c1_i32] : memref<8x!tpu.dma_semaphore, #tpu.memory_space<semaphore_mem>> -> memref<1x!tpu.dma_semaphore, #tpu.memory_space<semaphore_mem>>
    %13 = tpu.memref_squeeze %12 : memref<1x!tpu.dma_semaphore, #tpu.memory_space<semaphore_mem>> -> memref<!tpu.dma_semaphore, #tpu.memory_space<semaphore_mem>>
    tpu.enqueue_dma source(%10 : memref<1x128xf32, #tpu.memory_space<any>>) target(%11 : memref<1x128xf32, #tpu.memory_space<vmem>>) target_semaphore(%13 : memref<!tpu.dma_semaphore, #tpu.memory_space<semaphore_mem>>)
    %c2 = arith.constant 2 : index
    %14 = memref.load %arg1[%c2] : memref<8xi32, #tpu.memory_space<smem>>
    %c0_i32_9 = arith.constant 0 : i32
    %15 = arith.maxsi %14, %c0_i32_9 : i32
    %c499_i32_10 = arith.constant 499 : i32
    %16 = arith.minsi %15, %c499_i32_10 : i32
    %c2_i32 = arith.constant 2 : i32
    %c0_i32_11 = arith.constant 0 : i32
    %17 = tpu.memref_slice %arg2[%16, %c0_i32_11] : memref<500x128xf32, #tpu.memory_space<any>> -> memref<1x128xf32, #tpu.memory_space<any>>
    %c2_i32_12 = arith.constant 2 : i32
    %c0_i32_13 = arith.constant 0 : i32
    %18 = tpu.memref_slice %arg7[%c2_i32_12, %c0_i32_13] : memref<8x128xf32, #tpu.memory_space<vmem>> -> memref<1x128xf32, #tpu.memory_space<vmem>>
    %19 = tpu.memref_slice %arg8[%c2_i32] : memref<8x!tpu.dma_semaphore, #tpu.memory_space<semaphore_mem>> -> memref<1x!tpu.dma_semaphore, #tpu.memory_space<semaphore_mem>>
    %20 = tpu.memref_squeeze %19 : memref<1x!tpu.dma_semaphore, #tpu.memory_space<semaphore_mem>> -> memref<!tpu.dma_semaphore, #tpu.memory_space<semaphore_mem>>
    tpu.enqueue_dma source(%17 : memref<1x128xf32, #tpu.memory_space<any>>) target(%18 : memref<1x128xf32, #tpu.memory_space<vmem>>) target_semaphore(%20 : memref<!tpu.dma_semaphore, #tpu.memory_space<semaphore_mem>>)
    %c3 = arith.constant 3 : index
    %21 = memref.load %arg1[%c3] : memref<8xi32, #tpu.memory_space<smem>>
    %c0_i32_14 = arith.constant 0 : i32
    %22 = arith.maxsi %21, %c0_i32_14 : i32
    %c499_i32_15 = arith.constant 499 : i32
    %23 = arith.minsi %22, %c499_i32_15 : i32
    %c3_i32 = arith.constant 3 : i32
    %c0_i32_16 = arith.constant 0 : i32
    %24 = tpu.memref_slice %arg2[%23, %c0_i32_16] : memref<500x128xf32, #tpu.memory_space<any>> -> memref<1x128xf32, #tpu.memory_space<any>>
    %c3_i32_17 = arith.constant 3 : i32
    %c0_i32_18 = arith.constant 0 : i32
    %25 = tpu.memref_slice %arg7[%c3_i32_17, %c0_i32_18] : memref<8x128xf32, #tpu.memory_space<vmem>> -> memref<1x128xf32, #tpu.memory_space<vmem>>
    %26 = tpu.memref_slice %arg8[%c3_i32] : memref<8x!tpu.dma_semaphore, #tpu.memory_space<semaphore_mem>> -> memref<1x!tpu.dma_semaphore, #tpu.memory_space<semaphore_mem>>
    %27 = tpu.memref_squeeze %26 : memref<1x!tpu.dma_semaphore, #tpu.memory_space<semaphore_mem>> -> memref<!tpu.dma_semaphore, #tpu.memory_space<semaphore_mem>>
    tpu.enqueue_dma source(%24 : memref<1x128xf32, #tpu.memory_space<any>>) target(%25 : memref<1x128xf32, #tpu.memory_space<vmem>>) target_semaphore(%27 : memref<!tpu.dma_semaphore, #tpu.memory_space<semaphore_mem>>)
    %c4 = arith.constant 4 : index
    %28 = memref.load %arg1[%c4] : memref<8xi32, #tpu.memory_space<smem>>
    %c0_i32_19 = arith.constant 0 : i32
    %29 = arith.maxsi %28, %c0_i32_19 : i32
    %c499_i32_20 = arith.constant 499 : i32
    %30 = arith.minsi %29, %c499_i32_20 : i32
    %c4_i32 = arith.constant 4 : i32
    %c0_i32_21 = arith.constant 0 : i32
    %31 = tpu.memref_slice %arg2[%30, %c0_i32_21] : memref<500x128xf32, #tpu.memory_space<any>> -> memref<1x128xf32, #tpu.memory_space<any>>
    %c4_i32_22 = arith.constant 4 : i32
    %c0_i32_23 = arith.constant 0 : i32
    %32 = tpu.memref_slice %arg7[%c4_i32_22, %c0_i32_23] : memref<8x128xf32, #tpu.memory_space<vmem>> -> memref<1x128xf32, #tpu.memory_space<vmem>>
    %33 = tpu.memref_slice %arg8[%c4_i32] : memref<8x!tpu.dma_semaphore, #tpu.memory_space<semaphore_mem>> -> memref<1x!tpu.dma_semaphore, #tpu.memory_space<semaphore_mem>>
    %34 = tpu.memref_squeeze %33 : memref<1x!tpu.dma_semaphore, #tpu.memory_space<semaphore_mem>> -> memref<!tpu.dma_semaphore, #tpu.memory_space<semaphore_mem>>
    tpu.enqueue_dma source(%31 : memref<1x128xf32, #tpu.memory_space<any>>) target(%32 : memref<1x128xf32, #tpu.memory_space<vmem>>) target_semaphore(%34 : memref<!tpu.dma_semaphore, #tpu.memory_space<semaphore_mem>>)
    %c5 = arith.constant 5 : index
    %35 = memref.load %arg1[%c5] : memref<8xi32, #tpu.memory_space<smem>>
    %c0_i32_24 = arith.constant 0 : i32
    %36 = arith.maxsi %35, %c0_i32_24 : i32
    %c499_i32_25 = arith.constant 499 : i32
    %37 = arith.minsi %36, %c499_i32_25 : i32
    %c5_i32 = arith.constant 5 : i32
    %c0_i32_26 = arith.constant 0 : i32
    %38 = tpu.memref_slice %arg2[%37, %c0_i32_26] : memref<500x128xf32, #tpu.memory_space<any>> -> memref<1x128xf32, #tpu.memory_space<any>>
    %c5_i32_27 = arith.constant 5 : i32
    %c0_i32_28 = arith.constant 0 : i32
    %39 = tpu.memref_slice %arg7[%c5_i32_27, %c0_i32_28] : memref<8x128xf32, #tpu.memory_space<vmem>> -> memref<1x128xf32, #tpu.memory_space<vmem>>
    %40 = tpu.memref_slice %arg8[%c5_i32] : memref<8x!tpu.dma_semaphore, #tpu.memory_space<semaphore_mem>> -> memref<1x!tpu.dma_semaphore, #tpu.memory_space<semaphore_mem>>
    %41 = tpu.memref_squeeze %40 : memref<1x!tpu.dma_semaphore, #tpu.memory_space<semaphore_mem>> -> memref<!tpu.dma_semaphore, #tpu.memory_space<semaphore_mem>>
    tpu.enqueue_dma source(%38 : memref<1x128xf32, #tpu.memory_space<any>>) target(%39 : memref<1x128xf32, #tpu.memory_space<vmem>>) target_semaphore(%41 : memref<!tpu.dma_semaphore, #tpu.memory_space<semaphore_mem>>)
    %c6 = arith.constant 6 : index
    %42 = memref.load %arg1[%c6] : memref<8xi32, #tpu.memory_space<smem>>
    %c0_i32_29 = arith.constant 0 : i32
    %43 = arith.maxsi %42, %c0_i32_29 : i32
    %c499_i32_30 = arith.constant 499 : i32
    %44 = arith.minsi %43, %c499_i32_30 : i32
    %c6_i32 = arith.constant 6 : i32
    %c0_i32_31 = arith.constant 0 : i32
    %45 = tpu.memref_slice %arg2[%44, %c0_i32_31] : memref<500x128xf32, #tpu.memory_space<any>> -> memref<1x128xf32, #tpu.memory_space<any>>
    %c6_i32_32 = arith.constant 6 : i32
    %c0_i32_33 = arith.constant 0 : i32
    %46 = tpu.memref_slice %arg7[%c6_i32_32, %c0_i32_33] : memref<8x128xf32, #tpu.memory_space<vmem>> -> memref<1x128xf32, #tpu.memory_space<vmem>>
    %47 = tpu.memref_slice %arg8[%c6_i32] : memref<8x!tpu.dma_semaphore, #tpu.memory_space<semaphore_mem>> -> memref<1x!tpu.dma_semaphore, #tpu.memory_space<semaphore_mem>>
    %48 = tpu.memref_squeeze %47 : memref<1x!tpu.dma_semaphore, #tpu.memory_space<semaphore_mem>> -> memref<!tpu.dma_semaphore, #tpu.memory_space<semaphore_mem>>
    tpu.enqueue_dma source(%45 : memref<1x128xf32, #tpu.memory_space<any>>) target(%46 : memref<1x128xf32, #tpu.memory_space<vmem>>) target_semaphore(%48 : memref<!tpu.dma_semaphore, #tpu.memory_space<semaphore_mem>>)
    %c7 = arith.constant 7 : index
    %49 = memref.load %arg1[%c7] : memref<8xi32, #tpu.memory_space<smem>>
    %c0_i32_34 = arith.constant 0 : i32
    %50 = arith.maxsi %49, %c0_i32_34 : i32
    %c499_i32_35 = arith.constant 499 : i32
    %51 = arith.minsi %50, %c499_i32_35 : i32
    %c7_i32 = arith.constant 7 : i32
    %c0_i32_36 = arith.constant 0 : i32
    %52 = tpu.memref_slice %arg2[%51, %c0_i32_36] : memref<500x128xf32, #tpu.memory_space<any>> -> memref<1x128xf32, #tpu.memory_space<any>>
    %c7_i32_37 = arith.constant 7 : i32
    %c0_i32_38 = arith.constant 0 : i32
    %53 = tpu.memref_slice %arg7[%c7_i32_37, %c0_i32_38] : memref<8x128xf32, #tpu.memory_space<vmem>> -> memref<1x128xf32, #tpu.memory_space<vmem>>
    %54 = tpu.memref_slice %arg8[%c7_i32] : memref<8x!tpu.dma_semaphore, #tpu.memory_space<semaphore_mem>> -> memref<1x!tpu.dma_semaphore, #tpu.memory_space<semaphore_mem>>
    %55 = tpu.memref_squeeze %54 : memref<1x!tpu.dma_semaphore, #tpu.memory_space<semaphore_mem>> -> memref<!tpu.dma_semaphore, #tpu.memory_space<semaphore_mem>>
    tpu.enqueue_dma source(%52 : memref<1x128xf32, #tpu.memory_space<any>>) target(%53 : memref<1x128xf32, #tpu.memory_space<vmem>>) target_semaphore(%55 : memref<!tpu.dma_semaphore, #tpu.memory_space<semaphore_mem>>)
    %c0_i32_39 = arith.constant 0 : i32
    %c0_i32_40 = arith.constant 0 : i32
    %56 = tpu.memref_slice %arg2[%2, %c0_i32_40] : memref<500x128xf32, #tpu.memory_space<any>> -> memref<1x128xf32, #tpu.memory_space<any>>
    %c0_i32_41 = arith.constant 0 : i32
    %c0_i32_42 = arith.constant 0 : i32
    %57 = tpu.memref_slice %arg7[%c0_i32_41, %c0_i32_42] : memref<8x128xf32, #tpu.memory_space<vmem>> -> memref<1x128xf32, #tpu.memory_space<vmem>>
    %58 = tpu.memref_slice %arg8[%c0_i32_39] : memref<8x!tpu.dma_semaphore, #tpu.memory_space<semaphore_mem>> -> memref<1x!tpu.dma_semaphore, #tpu.memory_space<semaphore_mem>>
    %59 = tpu.memref_squeeze %58 : memref<1x!tpu.dma_semaphore, #tpu.memory_space<semaphore_mem>> -> memref<!tpu.dma_semaphore, #tpu.memory_space<semaphore_mem>>
    tpu.wait_dma2 semaphore(%59 : memref<!tpu.dma_semaphore, #tpu.memory_space<semaphore_mem>>) src(%56 : memref<1x128xf32, #tpu.memory_space<any>>) dst(%57 : memref<1x128xf32, #tpu.memory_space<vmem>>)
    %c1_i32_43 = arith.constant 1 : i32
    %c0_i32_44 = arith.constant 0 : i32
    %60 = tpu.memref_slice %arg2[%9, %c0_i32_44] : memref<500x128xf32, #tpu.memory_space<any>> -> memref<1x128xf32, #tpu.memory_space<any>>
    %c1_i32_45 = arith.constant 1 : i32
    %c0_i32_46 = arith.constant 0 : i32
    %61 = tpu.memref_slice %arg7[%c1_i32_45, %c0_i32_46] : memref<8x128xf32, #tpu.memory_space<vmem>> -> memref<1x128xf32, #tpu.memory_space<vmem>>
    %62 = tpu.memref_slice %arg8[%c1_i32_43] : memref<8x!tpu.dma_semaphore, #tpu.memory_space<semaphore_mem>> -> memref<1x!tpu.dma_semaphore, #tpu.memory_space<semaphore_mem>>
    %63 = tpu.memref_squeeze %62 : memref<1x!tpu.dma_semaphore, #tpu.memory_space<semaphore_mem>> -> memref<!tpu.dma_semaphore, #tpu.memory_space<semaphore_mem>>
    tpu.wait_dma2 semaphore(%63 : memref<!tpu.dma_semaphore, #tpu.memory_space<semaphore_mem>>) src(%60 : memref<1x128xf32, #tpu.memory_space<any>>) dst(%61 : memref<1x128xf32, #tpu.memory_space<vmem>>)
    %c2_i32_47 = arith.constant 2 : i32
    %c0_i32_48 = arith.constant 0 : i32
    %64 = tpu.memref_slice %arg2[%16, %c0_i32_48] : memref<500x128xf32, #tpu.memory_space<any>> -> memref<1x128xf32, #tpu.memory_space<any>>
    %c2_i32_49 = arith.constant 2 : i32
    %c0_i32_50 = arith.constant 0 : i32
    %65 = tpu.memref_slice %arg7[%c2_i32_49, %c0_i32_50] : memref<8x128xf32, #tpu.memory_space<vmem>> -> memref<1x128xf32, #tpu.memory_space<vmem>>
    %66 = tpu.memref_slice %arg8[%c2_i32_47] : memref<8x!tpu.dma_semaphore, #tpu.memory_space<semaphore_mem>> -> memref<1x!tpu.dma_semaphore, #tpu.memory_space<semaphore_mem>>
    %67 = tpu.memref_squeeze %66 : memref<1x!tpu.dma_semaphore, #tpu.memory_space<semaphore_mem>> -> memref<!tpu.dma_semaphore, #tpu.memory_space<semaphore_mem>>
    tpu.wait_dma2 semaphore(%67 : memref<!tpu.dma_semaphore, #tpu.memory_space<semaphore_mem>>) src(%64 : memref<1x128xf32, #tpu.memory_space<any>>) dst(%65 : memref<1x128xf32, #tpu.memory_space<vmem>>)
    %c3_i32_51 = arith.constant 3 : i32
    %c0_i32_52 = arith.constant 0 : i32
    %68 = tpu.memref_slice %arg2[%23, %c0_i32_52] : memref<500x128xf32, #tpu.memory_space<any>> -> memref<1x128xf32, #tpu.memory_space<any>>
    %c3_i32_53 = arith.constant 3 : i32
    %c0_i32_54 = arith.constant 0 : i32
    %69 = tpu.memref_slice %arg7[%c3_i32_53, %c0_i32_54] : memref<8x128xf32, #tpu.memory_space<vmem>> -> memref<1x128xf32, #tpu.memory_space<vmem>>
    %70 = tpu.memref_slice %arg8[%c3_i32_51] : memref<8x!tpu.dma_semaphore, #tpu.memory_space<semaphore_mem>> -> memref<1x!tpu.dma_semaphore, #tpu.memory_space<semaphore_mem>>
    %71 = tpu.memref_squeeze %70 : memref<1x!tpu.dma_semaphore, #tpu.memory_space<semaphore_mem>> -> memref<!tpu.dma_semaphore, #tpu.memory_space<semaphore_mem>>
    tpu.wait_dma2 semaphore(%71 : memref<!tpu.dma_semaphore, #tpu.memory_space<semaphore_mem>>) src(%68 : memref<1x128xf32, #tpu.memory_space<any>>) dst(%69 : memref<1x128xf32, #tpu.memory_space<vmem>>)
    %c4_i32_55 = arith.constant 4 : i32
    %c0_i32_56 = arith.constant 0 : i32
    %72 = tpu.memref_slice %arg2[%30, %c0_i32_56] : memref<500x128xf32, #tpu.memory_space<any>> -> memref<1x128xf32, #tpu.memory_space<any>>
    %c4_i32_57 = arith.constant 4 : i32
    %c0_i32_58 = arith.constant 0 : i32
    %73 = tpu.memref_slice %arg7[%c4_i32_57, %c0_i32_58] : memref<8x128xf32, #tpu.memory_space<vmem>> -> memref<1x128xf32, #tpu.memory_space<vmem>>
    %74 = tpu.memref_slice %arg8[%c4_i32_55] : memref<8x!tpu.dma_semaphore, #tpu.memory_space<semaphore_mem>> -> memref<1x!tpu.dma_semaphore, #tpu.memory_space<semaphore_mem>>
    %75 = tpu.memref_squeeze %74 : memref<1x!tpu.dma_semaphore, #tpu.memory_space<semaphore_mem>> -> memref<!tpu.dma_semaphore, #tpu.memory_space<semaphore_mem>>
    tpu.wait_dma2 semaphore(%75 : memref<!tpu.dma_semaphore, #tpu.memory_space<semaphore_mem>>) src(%72 : memref<1x128xf32, #tpu.memory_space<any>>) dst(%73 : memref<1x128xf32, #tpu.memory_space<vmem>>)
    %c5_i32_59 = arith.constant 5 : i32
    %c0_i32_60 = arith.constant 0 : i32
    %76 = tpu.memref_slice %arg2[%37, %c0_i32_60] : memref<500x128xf32, #tpu.memory_space<any>> -> memref<1x128xf32, #tpu.memory_space<any>>
    %c5_i32_61 = arith.constant 5 : i32
    %c0_i32_62 = arith.constant 0 : i32
    %77 = tpu.memref_slice %arg7[%c5_i32_61, %c0_i32_62] : memref<8x128xf32, #tpu.memory_space<vmem>> -> memref<1x128xf32, #tpu.memory_space<vmem>>
    %78 = tpu.memref_slice %arg8[%c5_i32_59] : memref<8x!tpu.dma_semaphore, #tpu.memory_space<semaphore_mem>> -> memref<1x!tpu.dma_semaphore, #tpu.memory_space<semaphore_mem>>
    %79 = tpu.memref_squeeze %78 : memref<1x!tpu.dma_semaphore, #tpu.memory_space<semaphore_mem>> -> memref<!tpu.dma_semaphore, #tpu.memory_space<semaphore_mem>>
    tpu.wait_dma2 semaphore(%79 : memref<!tpu.dma_semaphore, #tpu.memory_space<semaphore_mem>>) src(%76 : memref<1x128xf32, #tpu.memory_space<any>>) dst(%77 : memref<1x128xf32, #tpu.memory_space<vmem>>)
    %c6_i32_63 = arith.constant 6 : i32
    %c0_i32_64 = arith.constant 0 : i32
    %80 = tpu.memref_slice %arg2[%44, %c0_i32_64] : memref<500x128xf32, #tpu.memory_space<any>> -> memref<1x128xf32, #tpu.memory_space<any>>
    %c6_i32_65 = arith.constant 6 : i32
    %c0_i32_66 = arith.constant 0 : i32
    %81 = tpu.memref_slice %arg7[%c6_i32_65, %c0_i32_66] : memref<8x128xf32, #tpu.memory_space<vmem>> -> memref<1x128xf32, #tpu.memory_space<vmem>>
    %82 = tpu.memref_slice %arg8[%c6_i32_63] : memref<8x!tpu.dma_semaphore, #tpu.memory_space<semaphore_mem>> -> memref<1x!tpu.dma_semaphore, #tpu.memory_space<semaphore_mem>>
    %83 = tpu.memref_squeeze %82 : memref<1x!tpu.dma_semaphore, #tpu.memory_space<semaphore_mem>> -> memref<!tpu.dma_semaphore, #tpu.memory_space<semaphore_mem>>
    tpu.wait_dma2 semaphore(%83 : memref<!tpu.dma_semaphore, #tpu.memory_space<semaphore_mem>>) src(%80 : memref<1x128xf32, #tpu.memory_space<any>>) dst(%81 : memref<1x128xf32, #tpu.memory_space<vmem>>)
    %c7_i32_67 = arith.constant 7 : i32
    %c0_i32_68 = arith.constant 0 : i32
    %84 = tpu.memref_slice %arg2[%51, %c0_i32_68] : memref<500x128xf32, #tpu.memory_space<any>> -> memref<1x128xf32, #tpu.memory_space<any>>
    %c7_i32_69 = arith.constant 7 : i32
    %c0_i32_70 = arith.constant 0 : i32
    %85 = tpu.memref_slice %arg7[%c7_i32_69, %c0_i32_70] : memref<8x128xf32, #tpu.memory_space<vmem>> -> memref<1x128xf32, #tpu.memory_space<vmem>>
    %86 = tpu.memref_slice %arg8[%c7_i32_67] : memref<8x!tpu.dma_semaphore, #tpu.memory_space<semaphore_mem>> -> memref<1x!tpu.dma_semaphore, #tpu.memory_space<semaphore_mem>>
    %87 = tpu.memref_squeeze %86 : memref<1x!tpu.dma_semaphore, #tpu.memory_space<semaphore_mem>> -> memref<!tpu.dma_semaphore, #tpu.memory_space<semaphore_mem>>
    tpu.wait_dma2 semaphore(%87 : memref<!tpu.dma_semaphore, #tpu.memory_space<semaphore_mem>>) src(%84 : memref<1x128xf32, #tpu.memory_space<any>>) dst(%85 : memref<1x128xf32, #tpu.memory_space<vmem>>)
    %c0_71 = arith.constant 0 : index
    %c0_72 = arith.constant 0 : index
    %88 = vector.load %arg7[%c0_71, %c0_72] : memref<8x128xf32, #tpu.memory_space<vmem>>, vector<8x128xf32>
    %c0_73 = arith.constant 0 : index
    %c0_74 = arith.constant 0 : index
    %89 = vector.load %arg3[%c0_73, %c0_74] : memref<128x128xf32, #tpu.memory_space<vmem>>, vector<128x128xf32>
    %cst = arith.constant dense<0.000000e+00> : vector<8x128xf32>
    %90 = tpu.matmul %88, %89, %cst {dimension_numbers = #tpu.dot_dimension_numbers<[1], [0], [0], [1], [0, 0, 1, 1], [], []>} : vector<8x128xf32>, vector<128x128xf32>, vector<8x128xf32> -> vector<8x128xf32>
    %c0_75 = arith.constant 0 : index
    %c0_76 = arith.constant 0 : index
    %91 = vector.load %arg5[%c0_75, %c0_76] : memref<2x128xf32, #tpu.memory_space<vmem>>, vector<1x128xf32>
    %92 = vector.broadcast %91 : vector<1x128xf32> to vector<8x128xf32>
    %93 = arith.addf %90, %92 : vector<8x128xf32>
    %94 = arith.negf %93 : vector<8x128xf32>
    %95 = math.exp %94 : vector<8x128xf32>
    %cst_77 = arith.constant 1.000000e+00 : f32
    %96 = vector.broadcast %cst_77 : f32 to vector<8x128xf32>
    %97 = arith.addf %96, %95 : vector<8x128xf32>
    %98 = arith.divf %96, %97 : vector<8x128xf32>
    %99 = arith.mulf %93, %98 : vector<8x128xf32>
    %c0_78 = arith.constant 0 : index
    %c0_79 = arith.constant 0 : index
    %100 = vector.load %arg4[%c0_78, %c0_79] : memref<128x128xf32, #tpu.memory_space<vmem>>, vector<128x128xf32>
    %cst_80 = arith.constant dense<0.000000e+00> : vector<8x128xf32>
    %101 = tpu.matmul %99, %100, %cst_80 {dimension_numbers = #tpu.dot_dimension_numbers<[1], [0], [0], [1], [0, 0, 1, 1], [], []>} : vector<8x128xf32>, vector<128x128xf32>, vector<8x128xf32> -> vector<8x128xf32>
    %c1_81 = arith.constant 1 : index
    %c0_82 = arith.constant 0 : index
    %102 = vector.load %arg5[%c1_81, %c0_82] : memref<2x128xf32, #tpu.memory_space<vmem>>, vector<1x128xf32>
    %103 = vector.broadcast %102 : vector<1x128xf32> to vector<8x128xf32>
    %104 = arith.addf %101, %103 : vector<8x128xf32>
    %105 = arith.negf %104 : vector<8x128xf32>
    %106 = math.exp %105 : vector<8x128xf32>
    %cst_83 = arith.constant 1.000000e+00 : f32
    %107 = vector.broadcast %cst_83 : f32 to vector<8x128xf32>
    %108 = arith.addf %107, %106 : vector<8x128xf32>
    %109 = arith.divf %107, %108 : vector<8x128xf32>
    %110 = arith.mulf %104, %109 : vector<8x128xf32>
    %c0_84 = arith.constant 0 : index
    %c0_85 = arith.constant 0 : index
    %111 = vector.load %arg6[%c0_84, %c0_85] : memref<8x128xf32, #tpu.memory_space<vmem>>, vector<8x128xf32>
    tpu.vector_store %arg6[%c0_84, %c0_85], %110 {strides = array<i32>} : memref<8x128xf32, #tpu.memory_space<vmem>>, vector<8x128xf32>,
    return
  }
  func.func @transform_1(%arg0: i32, %arg1: memref<8xi32, #tpu.memory_space<smem>>) -> (i32, i32) {
    %c0_i32 = arith.constant 0 : i32
    %c0_i32_0 = arith.constant 0 : i32
    %c0_i32_1 = arith.constant 0 : i32
    return %c0_i32, %c0_i32_0 : i32, i32
  }
  func.func @transform_2(%arg0: i32, %arg1: memref<8xi32, #tpu.memory_space<smem>>) -> (i32, i32) {
    %c0_i32 = arith.constant 0 : i32
    %c0_i32_0 = arith.constant 0 : i32
    %c0_i32_1 = arith.constant 0 : i32
    return %c0_i32, %c0_i32_0 : i32, i32
  }
  func.func @transform_3(%arg0: i32, %arg1: memref<8xi32, #tpu.memory_space<smem>>) -> (i32, i32) {
    %c0_i32 = arith.constant 0 : i32
    %c0_i32_0 = arith.constant 0 : i32
    %c0_i32_1 = arith.constant 0 : i32
    return %c0_i32, %c0_i32_0 : i32, i32
  }
  func.func @transform_4(%arg0: i32, %arg1: memref<8xi32, #tpu.memory_space<smem>>) -> (i32, i32) {
    %c0_i32 = arith.constant 0 : i32
    %c0_i32_0 = arith.constant 0 : i32
    %c0_i32_1 = arith.constant 0 : i32
    return %c0_i32, %c0_i32_0 : i32, i32
  }
}

</mosaic_0001>

<llo_original>
// kernel: diffusion_embedding_forward.1
$region0: #{diffusion_embedding_forward.1}
  #allocation0 [shape = 'u32[]', space=smem, size = 0x4, offset = 0x4, fixed_abs, tag = 'smem constant byte address 0x4 - core index']
  #allocation1 [shape = 'u32[144,128]{1,0:T(1,128)}', space=vmem, size = 0x12000, scoped, tag = 'internal scratch']
  #allocation2 [shape = 'f32[8,128]{1,0:T(8,128)}', space=vmem, size = 0x1000, scoped, tag = 'scratch operand']
  #allocation3 [shape = 's32[8]{0}', space=sflag, size = 0x20, scoped, tag = 'scratch operand']
  #allocation4 [shape = 's32[1]{0}', space=sflag, size = 0x4, scoped, tag = 'scoped memory for diffusion_embedding_forward.1']
  #allocation5 [shape = 'u8[512]{0}', space=smem, size = 0x200, scoped, tag = 'prefetched SMEM operand 0']
  #allocation12 [shape = 's32[]', space=sflag, size = 0x4, offset = 0, fixed_abs, tag = 'sflag constant byte address 0x0 - dummy sync flag']
  #allocation13 [shape = 's32[]', space=sflag, size = 0x4, offset = 0, fixed_abs, tag = 'sflag constant byte address 0x0 - dummy sync flag']
  #allocation14 [shape = 'u32[]', space=smem, size = 0x4, offset = 0x44, fixed_abs, tag = 'smem constant byte address 0x44 - assertion arg 0']
  #allocation15 [shape = 'u32[]', space=smem, size = 0x4, offset = 0x48, fixed_abs, tag = 'smem constant byte address 0x48 - assertion arg 1']
  #allocation16 [shape = 's32[]', space=sflag, size = 0x4, offset = 0, fixed_abs, tag = 'sflag constant byte address 0x0 - dummy sync flag']
  #allocation17 [shape = 's32[]', space=sflag, size = 0x4, offset = 0, fixed_abs, tag = 'sflag constant byte address 0x0 - dummy sync flag']
  #allocation18 [shape = 's32[]', space=sflag, size = 0x4, offset = 0, fixed_abs, tag = 'sflag constant byte address 0x0 - dummy sync flag']
  #allocation19 [shape = 's32[]', space=sflag, size = 0x4, offset = 0, fixed_abs, tag = 'sflag constant byte address 0x0 - dummy sync flag']
  #allocation20 [shape = 's32[]', space=sflag, size = 0x4, offset = 0, fixed_abs, tag = 'sflag constant byte address 0x0 - dummy sync flag']
  #allocation21 [shape = 's32[]', space=sflag, size = 0x4, offset = 0, fixed_abs, tag = 'sflag constant byte address 0x0 - dummy sync flag']
  #allocation22 [shape = 's32[]', space=sflag, size = 0x4, offset = 0, fixed_abs, tag = 'sflag constant byte address 0x0 - dummy sync flag']
  #allocation23 [shape = 's32[]', space=sflag, size = 0x4, offset = 0, fixed_abs, tag = 'sflag constant byte address 0x0 - dummy sync flag']
  #allocation24 [shape = 's32[]', space=sflag, size = 0x4, offset = 0, fixed_abs, tag = 'sflag constant byte address 0x0 - dummy sync flag']
  #allocation25 [shape = 's32[]', space=sflag, size = 0x4, offset = 0, fixed_abs, tag = 'sflag constant byte address 0x0 - dummy sync flag']
  #allocation26 [shape = 's32[]', space=sflag, size = 0x4, offset = 0, fixed_abs, tag = 'sflag constant byte address 0x0 - dummy sync flag']
  #allocation27 [shape = 's32[]', space=sflag, size = 0x4, offset = 0, fixed_abs, tag = 'sflag constant byte address 0x0 - dummy sync flag']
  #allocation28 [shape = 's32[]', space=sflag, size = 0x4, offset = 0, fixed_abs, tag = 'sflag constant byte address 0x0 - dummy sync flag']
  #allocation29 [shape = 's32[]', space=sflag, size = 0x4, offset = 0, fixed_abs, tag = 'sflag constant byte address 0x0 - dummy sync flag']
  %s0 = inlined_call_operand.hbm [shape: s32[8], index: 0, kind: input, shape index: {}]
  %s1 = inlined_call_operand.hbm [shape: f32[500,128], index: 1, kind: input, shape index: {}]
  %s2 = inlined_call_operand.hbm [shape: f32[128,128], index: 2, kind: input, shape index: {}]
  %s3 = inlined_call_operand.hbm [shape: f32[128,128], index: 3, kind: input, shape index: {}]
  %s4 = inlined_call_operand.vmem [shape: f32[2,128], index: 4, kind: input, shape index: {}]
  %s5 = inlined_call_operand.hbm [shape: f32[8,128], index: 5, kind: output, shape index: {}]
  %s6 = sld [smem:[#allocation0]]
  $region62: #{diffusion_embedding_forward.1} parent=0
    _
  %s8 = ssub.s32 1, %s6
  %s9 = scalar_select 0, %s8, %s6
  %11 = dma.hbm_to_smem %s0, 16, [#allocation5], [#allocation4]
  %12 = dma.done [#allocation4], 16
  %13 = sfence
  $region1: #{diffusion_embedding_forward.1} parent=0
    #allocation6 [shape = 'u8[65536]{0}', space=vmem, size = 0x10000, scoped, tag = 'input window, operand 2, single buffered']
    #allocation7 [shape = 's32[1]{0}', space=sflag, size = 0x4, scoped, tag = 'scoped memory for diffusion_embedding_forward.1']
    #allocation8 [shape = 's32[1]{0}', space=sflag, size = 0x4, scoped, tag = 'scoped memory for diffusion_embedding_forward.1']
    #allocation9 [shape = 'u8[65536]{0}', space=vmem, size = 0x10000, scoped, tag = 'input window, operand 3, single buffered']
    #allocation10 [shape = 's32[1]{0}', space=sflag, size = 0x4, scoped, tag = 'scoped memory for diffusion_embedding_forward.1']
    #allocation11 [shape = 'u8[4096]{0}', space=vmem, size = 0x1000, scoped, tag = 'output window, operand 0, single buffered']
    %14 = vsyncpa [#allocation7], 0
    %15 = vsyncpa [#allocation10], 0
    %16 = vsyncpa [#allocation8], 0
    // Predicated region
    $region2: #{diffusion_embedding_forward.1} parent=1 // pred_check
      _
    $region3: #{diffusion_embedding_forward.1} parent=1 // pred_check_branch
      %18 = sbr.rel (0) target = $region5
    $region4: #{diffusion_embedding_forward.1} parent=1 // pred_region
      %s20 = ssub.s32 2048, 2048
      %21 = vsyncadd [#allocation7], %s20
      %s22 = sshll.u32 [#allocation6], 4
      %s23 = int_to_ptr.vmem [resolvable:$true] %s22
      %28 = dma.hbm_to_vmem [thread:$0]  %s2, 2048, %s23, [#allocation7], 128, 128, 8
    $region5: #{diffusion_embedding_forward.1} parent=1 // pred_fallthru
      _
    // Predicated region
    $region6: #{diffusion_embedding_forward.1} parent=1 // pred_check
      _
    $region7: #{diffusion_embedding_forward.1} parent=1 // pred_check_branch
      %30 = sbr.rel (0) target = $region9
    $region8: #{diffusion_embedding_forward.1} parent=1 // pred_region
      %s32 = ssub.s32 2048, 2048
      %33 = vsyncadd [#allocation10], %s32
      %s34 = sshll.u32 [#allocation9], 4
      %s35 = int_to_ptr.vmem [resolvable:$true] %s34
      %40 = dma.hbm_to_vmem [thread:$0]  %s3, 2048, %s35, [#allocation10], 128, 128, 8
    $region9: #{diffusion_embedding_forward.1} parent=1 // pred_fallthru
      _
    // Predicated region
    $region10: #{diffusion_embedding_forward.1} parent=1 // pred_check
      _
    $region11: #{diffusion_embedding_forward.1} parent=1 // pred_check_branch
      %42 = sbr.rel (0) target = $region13
    $region12: #{diffusion_embedding_forward.1} parent=1 // pred_region
      _
    $region13: #{diffusion_embedding_forward.1} parent=1 // pred_fallthru
      _
    // Predicated region
    $region14: #{diffusion_embedding_forward.1} parent=1 // pred_check
      _
    $region15: #{diffusion_embedding_forward.1} parent=1 // pred_check_branch
      %44 = sbr.rel (0) target = $region17
    $region16: #{diffusion_embedding_forward.1} parent=1 // pred_region
      %45 = dma.done [#allocation7], 2048
    $region17: #{diffusion_embedding_forward.1} parent=1 // pred_fallthru
      _
    // Predicated region
    $region18: #{diffusion_embedding_forward.1} parent=1 // pred_check
      _
    $region19: #{diffusion_embedding_forward.1} parent=1 // pred_check_branch
      %47 = sbr.rel (0) target = $region21
    $region20: #{diffusion_embedding_forward.1} parent=1 // pred_region
      %48 = dma.done [#allocation10], 2048
    $region21: #{diffusion_embedding_forward.1} parent=1 // pred_fallthru
      _
    %s49 = sld [smem:[#allocation5]]
    %p50 = scmp.gt.s32.totalorder %s49, 0
    %s51 = scalar_select %p50, %s49, 0
    %p52 = scmp.lt.s32.totalorder %s51, 499
    %s53 = scalar_select %p52, %s51, 499
    %s54 = smul.addr %s53, 16
    %s55 = scalar_lea.hbm %s1, %s54
    // Predicated region
    $region22: #{diffusion_embedding_forward.1} parent=1 // pred_check
      _
    $region23: #{diffusion_embedding_forward.1} parent=1 // pred_check_branch
      %57 = sbr.rel target = $region25
    $region24: #{diffusion_embedding_forward.1} parent=1 // pred_region
      %58 = sst [smem:[#allocation14]] [#allocation13]
      %59 = sst [smem:[#allocation15]] [#allocation12]
    $region25: #{diffusion_embedding_forward.1} parent=1 // pred_fallthru
      _
    %61 = shalt.err (0)
    %s63 = sshll.u32 [#allocation2], 4
    %s64 = int_to_ptr.vmem [resolvable:$true] %s63
    %66 = dma.hbm_to_vmem [thread:$0]  %s55, 16, %s64, [#allocation3]
    %s67 = sld [smem:[#allocation5 + $0x1]]
    %p68 = scmp.gt.s32.totalorder %s67, 0
    %s69 = scalar_select %p68, %s67, 0
    %p70 = scmp.lt.s32.totalorder %s69, 499
    %s71 = scalar_select %p70, %s69, 499
    %s72 = smul.addr %s71, 16
    %s73 = scalar_lea.hbm %s1, %s72
    %s74 = scalar_lea.vmem [#allocation2], 1
    %s75 = scalar_lea.sflag [#allocation3], 1
    // Predicated region
    $region26: #{diffusion_embedding_forward.1} parent=1 // pred_check
      _
    $region27: #{diffusion_embedding_forward.1} parent=1 // pred_check_branch
      %77 = sbr.rel target = $region29
    $region28: #{diffusion_embedding_forward.1} parent=1 // pred_region
      %78 = sst [smem:[#allocation14]] [#allocation17]
      %79 = sst [smem:[#allocation15]] [#allocation16]
    $region29: #{diffusion_embedding_forward.1} parent=1 // pred_fallthru
      _
    %81 = shalt.err (0)
    %s83 = sshll.u32 %s74, 4
    %s84 = int_to_ptr.vmem [resolvable:$true] %s83
    %86 = dma.hbm_to_vmem [thread:$0]  %s73, 16, %s84, %s75
    %s87 = sld [smem:[#allocation5 + $0x2]]
    %p88 = scmp.gt.s32.totalorder %s87, 0
    %s89 = scalar_select %p88, %s87, 0
    %p90 = scmp.lt.s32.totalorder %s89, 499
    %s91 = scalar_select %p90, %s89, 499
    %s92 = smul.addr %s91, 16
    %s93 = scalar_lea.hbm %s1, %s92
    %s94 = scalar_lea.vmem [#allocation2], 2
    %s95 = scalar_lea.sflag [#allocation3], 2
    // Predicated region
    $region30: #{diffusion_embedding_forward.1} parent=1 // pred_check
      _
    $region31: #{diffusion_embedding_forward.1} parent=1 // pred_check_branch
      %97 = sbr.rel target = $region33
    $region32: #{diffusion_embedding_forward.1} parent=1 // pred_region
      %98 = sst [smem:[#allocation14]] [#allocation19]
      %99 = sst [smem:[#allocation15]] [#allocation18]
    $region33: #{diffusion_embedding_forward.1} parent=1 // pred_fallthru
      _
    %101 = shalt.err (0)
    %s103 = sshll.u32 %s94, 4
    %s104 = int_to_ptr.vmem [resolvable:$true] %s103
    %106 = dma.hbm_to_vmem [thread:$0]  %s93, 16, %s104, %s95
    %s107 = sld [smem:[#allocation5 + $0x3]]
    %p108 = scmp.gt.s32.totalorder %s107, 0
    %s109 = scalar_select %p108, %s107, 0
    %p110 = scmp.lt.s32.totalorder %s109, 499
    %s111 = scalar_select %p110, %s109, 499
    %s112 = smul.addr %s111, 16
    %s113 = scalar_lea.hbm %s1, %s112
    %s114 = scalar_lea.vmem [#allocation2], 3
    %s115 = scalar_lea.sflag [#allocation3], 3
    // Predicated region
    $region34: #{diffusion_embedding_forward.1} parent=1 // pred_check
      _
    $region35: #{diffusion_embedding_forward.1} parent=1 // pred_check_branch
      %117 = sbr.rel target = $region37
    $region36: #{diffusion_embedding_forward.1} parent=1 // pred_region
      %118 = sst [smem:[#allocation14]] [#allocation21]
      %119 = sst [smem:[#allocation15]] [#allocation20]
    $region37: #{diffusion_embedding_forward.1} parent=1 // pred_fallthru
      _
    %121 = shalt.err (0)
    %s123 = sshll.u32 %s114, 4
    %s124 = int_to_ptr.vmem [resolvable:$true] %s123
    %126 = dma.hbm_to_vmem [thread:$0]  %s113, 16, %s124, %s115
    %s127 = sld [smem:[#allocation5 + $0x4]]
    %p128 = scmp.gt.s32.totalorder %s127, 0
    %s129 = scalar_select %p128, %s127, 0
    %p130 = scmp.lt.s32.totalorder %s129, 499
    %s131 = scalar_select %p130, %s129, 499
    %s132 = smul.addr %s131, 16
    %s133 = scalar_lea.hbm %s1, %s132
    %s134 = scalar_lea.vmem [#allocation2], 4
    %s135 = scalar_lea.sflag [#allocation3], 4
    // Predicated region
    $region38: #{diffusion_embedding_forward.1} parent=1 // pred_check
      _
    $region39: #{diffusion_embedding_forward.1} parent=1 // pred_check_branch
      %137 = sbr.rel target = $region41
    $region40: #{diffusion_embedding_forward.1} parent=1 // pred_region
      %138 = sst [smem:[#allocation14]] [#allocation23]
      %139 = sst [smem:[#allocation15]] [#allocation22]
    $region41: #{diffusion_embedding_forward.1} parent=1 // pred_fallthru
      _
    %141 = shalt.err (0)
    %s143 = sshll.u32 %s134, 4
    %s144 = int_to_ptr.vmem [resolvable:$true] %s143
    %146 = dma.hbm_to_vmem [thread:$0]  %s133, 16, %s144, %s135
    %s147 = sld [smem:[#allocation5 + $0x5]]
    %p148 = scmp.gt.s32.totalorder %s147, 0
    %s149 = scalar_select %p148, %s147, 0
    %p150 = scmp.lt.s32.totalorder %s149, 499
    %s151 = scalar_select %p150, %s149, 499
    %s152 = smul.addr %s151, 16
    %s153 = scalar_lea.hbm %s1, %s152
    %s154 = scalar_lea.vmem [#allocation2], 5
    %s155 = scalar_lea.sflag [#allocation3], 5
    // Predicated region
    $region42: #{diffusion_embedding_forward.1} parent=1 // pred_check
      _
    $region43: #{diffusion_embedding_forward.1} parent=1 // pred_check_branch
      %157 = sbr.rel target = $region45
    $region44: #{diffusion_embedding_forward.1} parent=1 // pred_region
      %158 = sst [smem:[#allocation14]] [#allocation25]
      %159 = sst [smem:[#allocation15]] [#allocation24]
    $region45: #{diffusion_embedding_forward.1} parent=1 // pred_fallthru
      _
    %161 = shalt.err (0)
    %s163 = sshll.u32 %s154, 4
    %s164 = int_to_ptr.vmem [resolvable:$true] %s163
    %166 = dma.hbm_to_vmem [thread:$0]  %s153, 16, %s164, %s155
    %s167 = sld [smem:[#allocation5 + $0x6]]
    %p168 = scmp.gt.s32.totalorder %s167, 0
    %s169 = scalar_select %p168, %s167, 0
    %p170 = scmp.lt.s32.totalorder %s169, 499
    %s171 = scalar_select %p170, %s169, 499
    %s172 = smul.addr %s171, 16
    %s173 = scalar_lea.hbm %s1, %s172
    %s174 = scalar_lea.vmem [#allocation2], 6
    %s175 = scalar_lea.sflag [#allocation3], 6
    // Predicated region
    $region46: #{diffusion_embedding_forward.1} parent=1 // pred_check
      _
    $region47: #{diffusion_embedding_forward.1} parent=1 // pred_check_branch
      %177 = sbr.rel target = $region49
    $region48: #{diffusion_embedding_forward.1} parent=1 // pred_region
      %178 = sst [smem:[#allocation14]] [#allocation27]
      %179 = sst [smem:[#allocation15]] [#allocation26]
    $region49: #{diffusion_embedding_forward.1} parent=1 // pred_fallthru
      _
    %181 = shalt.err (0)
    %s183 = sshll.u32 %s174, 4
    %s184 = int_to_ptr.vmem [resolvable:$true] %s183
    %186 = dma.hbm_to_vmem [thread:$0]  %s173, 16, %s184, %s175
    %s187 = sld [smem:[#allocation5 + $0x7]]
    %p188 = scmp.gt.s32.totalorder %s187, 0
    %s189 = scalar_select %p188, %s187, 0
    %p190 = scmp.lt.s32.totalorder %s189, 499
    %s191 = scalar_select %p190, %s189, 499
    %s192 = smul.addr %s191, 16
    %s193 = scalar_lea.hbm %s1, %s192
    %s194 = scalar_lea.vmem [#allocation2], 7
    %s195 = scalar_lea.sflag [#allocation3], 7
    // Predicated region
    $region50: #{diffusion_embedding_forward.1} parent=1 // pred_check
      _
    $region51: #{diffusion_embedding_forward.1} parent=1 // pred_check_branch
      %197 = sbr.rel target = $region53
    $region52: #{diffusion_embedding_forward.1} parent=1 // pred_region
      %198 = sst [smem:[#allocation14]] [#allocation29]
      %199 = sst [smem:[#allocation15]] [#allocation28]
    $region53: #{diffusion_embedding_forward.1} parent=1 // pred_fallthru
      _
    %201 = shalt.err (0)
    %s203 = sshll.u32 %s194, 4
    %s204 = int_to_ptr.vmem [resolvable:$true] %s203
    %206 = dma.hbm_to_vmem [thread:$0]  %s193, 16, %s204, %s195
    %s207 = smul.u32 1, 1
    %s208 = sshll.u32 %s207, 4
    %209 = dma.done [#allocation3], %s208
    %s210 = sshll.u32 %s207, 4
    %211 = dma.done %s75, %s210
    %s212 = sshll.u32 %s207, 4
    %213 = dma.done %s95, %s212
    %s214 = sshll.u32 %s207, 4
    %215 = dma.done %s115, %s214
    %s216 = sshll.u32 %s207, 4
    %217 = dma.done %s135, %s216
    %s218 = sshll.u32 %s207, 4
    %219 = dma.done %s155, %s218
    %s220 = sshll.u32 %s207, 4
    %221 = dma.done %s175, %s220
    %s222 = sshll.u32 %s207, 4
    %223 = dma.done %s195, %s222
    %v224 = vld [vmem:[#allocation2] sm:$0xff]
    %v225 = vld [vmem:[#allocation6] sm:$0xff]
    %v226 = vld [vmem:[#allocation6 + $0x8] sm:$0xff]
    %v227 = vld [vmem:[#allocation6 + $0x10] sm:$0xff]
    %v228 = vld [vmem:[#allocation6 + $0x18] sm:$0xff]
    %v229 = vld [vmem:[#allocation6 + $0x20] sm:$0xff]
    %v230 = vld [vmem:[#allocation6 + $0x28] sm:$0xff]
    %v231 = vld [vmem:[#allocation6 + $0x30] sm:$0xff]
    %v232 = vld [vmem:[#allocation6 + $0x38] sm:$0xff]
    %v233 = vld [vmem:[#allocation6 + $0x40] sm:$0xff]
    %v234 = vld [vmem:[#allocation6 + $0x48] sm:$0xff]
    %v235 = vld [vmem:[#allocation6 + $0x50] sm:$0xff]
    %v236 = vld [vmem:[#allocation6 + $0x58] sm:$0xff]
    %v237 = vld [vmem:[#allocation6 + $0x60] sm:$0xff]
    %v238 = vld [vmem:[#allocation6 + $0x68] sm:$0xff]
    %v239 = vld [vmem:[#allocation6 + $0x70] sm:$0xff]
    %v240 = vld [vmem:[#allocation6 + $0x78] sm:$0xff]
    %v241 = vld [vmem:[%s4] sm:$0x1]
    %v242 = vlaneseq
    %v243 = vshrl.u32 %v242, 7
    %v244 = vsub.s32 0, %v243
    %v245 = vrot.slane %v241, %v244
    %246 = vmatprep.subr.mxu0 0.0
    %247 = vmatpush1.msra.mxu0 %v225
    %248 = vmatprep.subr.mxu0 0.0
    %249 = vmatpush1.msra.mxu0 %v226
    %250 = vmatprep.subr.mxu0 0.0
    %251 = vmatpush1.msra.mxu0 %v227
    %252 = vmatprep.subr.mxu0 0.0
    %253 = vmatpush1.msra.mxu0 %v228
    %254 = vmatprep.subr.mxu0 0.0
    %255 = vmatpush1.msra.mxu0 %v229
    %256 = vmatprep.subr.mxu0 0.0
    %257 = vmatpush1.msra.mxu0 %v230
    %258 = vmatprep.subr.mxu0 0.0
    %259 = vmatpush1.msra.mxu0 %v231
    %260 = vmatprep.subr.mxu0 0.0
    %261 = vmatpush1.msra.mxu0 %v232
    %262 = vmatprep.subr.mxu0 0.0
    %263 = vmatpush1.msra.mxu0 %v233
    %264 = vmatprep.subr.mxu0 0.0
    %265 = vmatpush1.msra.mxu0 %v234
    %266 = vmatprep.subr.mxu0 0.0
    %267 = vmatpush1.msra.mxu0 %v235
    %268 = vmatprep.subr.mxu0 0.0
    %269 = vmatpush1.msra.mxu0 %v236
    %270 = vmatprep.subr.mxu0 0.0
    %271 = vmatpush1.msra.mxu0 %v237
    %272 = vmatprep.subr.mxu0 0.0
    %273 = vmatpush1.msra.mxu0 %v238
    %274 = vmatprep.subr.mxu0 0.0
    %275 = vmatpush1.msra.mxu0 %v239
    %276 = vmatprep.subr.mxu0 0.0
    %277 = vmatpush1.msra.mxu0 %v240
    %278 = vmatprep.subr.mxu0 0.0
    %279 = vmatpush1.msra.mxu0 0.0
    %280 = vmatprep.subr.mxu0 0.0
    %281 = vmatpush1.msra.mxu0 0.0
    %282 = vmatprep.subr.mxu0 0.0
    %283 = vmatpush1.msra.mxu0 0.0
    %284 = vmatprep.subr.mxu0 0.0
    %285 = vmatpush1.msra.mxu0 0.0
    %286 = vmatprep.subr.mxu0 0.0
    %287 = vmatpush1.msra.mxu0 0.0
    %288 = vmatprep.subr.mxu0 0.0
    %289 = vmatpush1.msra.mxu0 0.0
    %290 = vmatprep.subr.mxu0 0.0
    %291 = vmatpush1.msra.mxu0 0.0
    %292 = vmatprep.subr.mxu0 0.0
    %293 = vmatpush1.msra.mxu0 0.0
    %294 = vmatprep.subr.mxu0 0.0
    %295 = vmatpush1.msra.mxu0 0.0
    %296 = vmatprep.subr.mxu0 0.0
    %297 = vmatpush1.msra.mxu0 0.0
    %298 = vmatprep.subr.mxu0 0.0
    %299 = vmatpush1.msra.mxu0 0.0
    %300 = vmatprep.subr.mxu0 0.0
    %301 = vmatpush1.msra.mxu0 0.0
    %302 = vmatprep.subr.mxu0 0.0
    %303 = vmatpush1.msra.mxu0 0.0
    %304 = vmatprep.subr.mxu0 0.0
    %305 = vmatpush1.msra.mxu0 0.0
    %306 = vmatprep.subr.mxu0 0.0
    %307 = vmatpush1.msra.mxu0 0.0
    %308 = vmatprep.subr.mxu0 0.0
    %309 = vmatpush1.msra.mxu0 0.0
    %310 = vmatprep.mubr.f32.mxu0 0.0
    %311 = vmatmul.mubr.f32.gmra.mrb[0].mxu0 %v224
    %v312 = vpop.f32.mrb[0].mxu0
    %v313 = vadd.f32 %v245, %v312
    %v314 = vpop.f32.mrb[0].mxu0
    %315 = vdwg.mxu0
    %v316 = vxor.u32 %v313, 2147483648
    %v317 = vmul.f32 %v316, 1.442695
    %v318 = vpow.pop %v317
    %v319 = vadd.f32 %v318, 1.0
    %v320 = vrcp.pop %v319
    %v321 = vmul.f32 1.0, %v320
    %v322 = vmul.f32 %v313, %v321
    %v323 = vld [vmem:[#allocation9] sm:$0xff]
    %v324 = vld [vmem:[#allocation9 + $0x8] sm:$0xff]
    %v325 = vld [vmem:[#allocation9 + $0x10] sm:$0xff]
    %v326 = vld [vmem:[#allocation9 + $0x18] sm:$0xff]
    %v327 = vld [vmem:[#allocation9 + $0x20] sm:$0xff]
    %v328 = vld [vmem:[#allocation9 + $0x28] sm:$0xff]
    %v329 = vld [vmem:[#allocation9 + $0x30] sm:$0xff]
    %v330 = vld [vmem:[#allocation9 + $0x38] sm:$0xff]
    %v331 = vld [vmem:[#allocation9 + $0x40] sm:$0xff]
    %v332 = vld [vmem:[#allocation9 + $0x48] sm:$0xff]
    %v333 = vld [vmem:[#allocation9 + $0x50] sm:$0xff]
    %v334 = vld [vmem:[#allocation9 + $0x58] sm:$0xff]
    %v335 = vld [vmem:[#allocation9 + $0x60] sm:$0xff]
    %v336 = vld [vmem:[#allocation9 + $0x68] sm:$0xff]
    %v337 = vld [vmem:[#allocation9 + $0x70] sm:$0xff]
    %v338 = vld [vmem:[#allocation9 + $0x78] sm:$0xff]
    %v339 = vld [vmem:[%s4 + $0x1] sm:$0x1]
    %v340 = vlaneseq
    %v341 = vshrl.u32 %v340, 7
    %v342 = vsub.s32 0, %v341
    %v343 = vrot.slane %v339, %v342
    %344 = vmatprep.subr.mxu0 0.0
    %345 = vmatpush1.msra.mxu0 %v323
    %346 = vmatprep.subr.mxu0 0.0
    %347 = vmatpush1.msra.mxu0 %v324
    %348 = vmatprep.subr.mxu0 0.0
    %349 = vmatpush1.msra.mxu0 %v325
    %350 = vmatprep.subr.mxu0 0.0
    %351 = vmatpush1.msra.mxu0 %v326
    %352 = vmatprep.subr.mxu0 0.0
    %353 = vmatpush1.msra.mxu0 %v327
    %354 = vmatprep.subr.mxu0 0.0
    %355 = vmatpush1.msra.mxu0 %v328
    %356 = vmatprep.subr.mxu0 0.0
    %357 = vmatpush1.msra.mxu0 %v329
    %358 = vmatprep.subr.mxu0 0.0
    %359 = vmatpush1.msra.mxu0 %v330
    %360 = vmatprep.subr.mxu0 0.0
    %361 = vmatpush1.msra.mxu0 %v331
    %362 = vmatprep.subr.mxu0 0.0
    %363 = vmatpush1.msra.mxu0 %v332
    %364 = vmatprep.subr.mxu0 0.0
    %365 = vmatpush1.msra.mxu0 %v333
    %366 = vmatprep.subr.mxu0 0.0
    %367 = vmatpush1.msra.mxu0 %v334
    %368 = vmatprep.subr.mxu0 0.0
    %369 = vmatpush1.msra.mxu0 %v335
    %370 = vmatprep.subr.mxu0 0.0
    %371 = vmatpush1.msra.mxu0 %v336
    %372 = vmatprep.subr.mxu0 0.0
    %373 = vmatpush1.msra.mxu0 %v337
    %374 = vmatprep.subr.mxu0 0.0
    %375 = vmatpush1.msra.mxu0 %v338
    %376 = vmatprep.subr.mxu0 0.0
    %377 = vmatpush1.msra.mxu0 0.0
    %378 = vmatprep.subr.mxu0 0.0
    %379 = vmatpush1.msra.mxu0 0.0
    %380 = vmatprep.subr.mxu0 0.0
    %381 = vmatpush1.msra.mxu0 0.0
    %382 = vmatprep.subr.mxu0 0.0
    %383 = vmatpush1.msra.mxu0 0.0
    %384 = vmatprep.subr.mxu0 0.0
    %385 = vmatpush1.msra.mxu0 0.0
    %386 = vmatprep.subr.mxu0 0.0
    %387 = vmatpush1.msra.mxu0 0.0
    %388 = vmatprep.subr.mxu0 0.0
    %389 = vmatpush1.msra.mxu0 0.0
    %390 = vmatprep.subr.mxu0 0.0
    %391 = vmatpush1.msra.mxu0 0.0
    %392 = vmatprep.subr.mxu0 0.0
    %393 = vmatpush1.msra.mxu0 0.0
    %394 = vmatprep.subr.mxu0 0.0
    %395 = vmatpush1.msra.mxu0 0.0
    %396 = vmatprep.subr.mxu0 0.0
    %397 = vmatpush1.msra.mxu0 0.0
    %398 = vmatprep.subr.mxu0 0.0
    %399 = vmatpush1.msra.mxu0 0.0
    %400 = vmatprep.subr.mxu0 0.0
    %401 = vmatpush1.msra.mxu0 0.0
    %402 = vmatprep.subr.mxu0 0.0
    %403 = vmatpush1.msra.mxu0 0.0
    %404 = vmatprep.subr.mxu0 0.0
    %405 = vmatpush1.msra.mxu0 0.0
    %406 = vmatprep.subr.mxu0 0.0
    %407 = vmatpush1.msra.mxu0 0.0
    %408 = vmatprep.mubr.f32.mxu0 0.0
    %409 = vmatmul.mubr.f32.gmra.mrb[0].mxu0 %v322
    %v410 = vpop.f32.mrb[0].mxu0
    %v411 = vadd.f32 %v343, %v410
    %v412 = vpop.f32.mrb[0].mxu0
    %413 = vdwg.mxu0
    %v414 = vxor.u32 %v411, 2147483648
    %v415 = vmul.f32 %v414, 1.442695
    %v416 = vpow.pop %v415
    %v417 = vadd.f32 %v416, 1.0
    %v418 = vrcp.pop %v417
    %v419 = vmul.f32 1.0, %v418
    %v420 = vmul.f32 %v411, %v419
    %421 = vst [vmem:[#allocation11] sm:$0xff] %v420
    // Predicated region
    $region54: #{diffusion_embedding_forward.1} parent=1 // pred_check
      _
    $region55: #{diffusion_embedding_forward.1} parent=1 // pred_check_branch
      %423 = sbr.rel (0) target = $region57
    $region56: #{diffusion_embedding_forward.1} parent=1 // pred_region
      %s425 = ssub.s32 128, 128
      %426 = vsyncadd [#allocation8], %s425
      %s428 = sshll.u32 [#allocation11], 4
      %s429 = int_to_ptr.vmem [resolvable:$true] %s428
      %431 = dma.vmem_to_hbm [thread:$0]  %s429, 128, %s5, [#allocation8]
    $region57: #{diffusion_embedding_forward.1} parent=1 // pred_fallthru
      _
    // Predicated region
    $region58: #{diffusion_embedding_forward.1} parent=1 // pred_check
      _
    $region59: #{diffusion_embedding_forward.1} parent=1 // pred_check_branch
      %433 = sbr.rel (0) target = $region61
    $region60: #{diffusion_embedding_forward.1} parent=1 // pred_region
      %434 = dma.done [#allocation8], 128
    $region61: #{diffusion_embedding_forward.1} parent=1 // pred_fallthru
      _
    %435 = vsyncpa [#allocation7], 1
    %436 = vsyncpa [#allocation10], 1
    %437 = vsyncpa [#allocation8], 1
  %438 = vsyncmov [#allocation3]
  %s439 = vpop.sfrf %438
  %p440 = scmp.eq.s32.totalorder %s439, 0
  %p441 = pneg %p440
  %443 = shalt.err (%p441)
  %s444 = scalar_lea.sflag [#allocation3], 1
  %445 = vsyncmov %s444
  %s446 = vpop.sfrf %445
  %p447 = scmp.eq.s32.totalorder %s446, 0
  %p448 = pneg %p447
  %450 = shalt.err (%p448)
  %s451 = scalar_lea.sflag [#allocation3], 2
  %452 = vsyncmov %s451
  %s453 = vpop.sfrf %452
  %p454 = scmp.eq.s32.totalorder %s453, 0
  %p455 = pneg %p454
  %457 = shalt.err (%p455)
  %s458 = scalar_lea.sflag [#allocation3], 3
  %459 = vsyncmov %s458
  %s460 = vpop.sfrf %459
  %p461 = scmp.eq.s32.totalorder %s460, 0
  %p462 = pneg %p461
  %464 = shalt.err (%p462)
  %s465 = scalar_lea.sflag [#allocation3], 4
  %466 = vsyncmov %s465
  %s467 = vpop.sfrf %466
  %p468 = scmp.eq.s32.totalorder %s467, 0
  %p469 = pneg %p468
  %471 = shalt.err (%p469)
  %s472 = scalar_lea.sflag [#allocation3], 5
  %473 = vsyncmov %s472
  %s474 = vpop.sfrf %473
  %p475 = scmp.eq.s32.totalorder %s474, 0
  %p476 = pneg %p475
  %478 = shalt.err (%p476)
  %s479 = scalar_lea.sflag [#allocation3], 6
  %480 = vsyncmov %s479
  %s481 = vpop.sfrf %480
  %p482 = scmp.eq.s32.totalorder %s481, 0
  %p483 = pneg %p482
  %485 = shalt.err (%p483)
  %s486 = scalar_lea.sflag [#allocation3], 7
  %487 = vsyncmov %s486
  %s488 = vpop.sfrf %487
  %p489 = scmp.eq.s32.totalorder %s488, 0
  %p490 = pneg %p489
  %492 = shalt.err (%p490)

</llo_original>
